<compile_context>
chip_gen: v5e
topology: v5e:2x2
jax: 0.10.0
libtpu: 0.0.40
codegen_flags: <defaults>
</compile_context>

<pallas_src>
import jax
import jax.numpy as jnp
from jax.experimental import pallas as pl
from jax.experimental.pallas import tpu as pltpu


def _round_up(v, m):
    return ((v + m - 1) // m) * m


# ----------------------------------------------------------------------------
# Pallas kernel: fused forward of ALL submodels (Linear -> ReLU -> Linear)
# ----------------------------------------------------------------------------
def _fused_mlp_kernel(x_ref, w1_ref, b1_ref, w2_ref, b2_ref, out_ref, hid_ref):
    # Cast x to the matmul dtype inside the kernel (kills the wrapper-side
    # cast op and its extra HBM round-trip on the bf16 path).
    x = x_ref[...].astype(w1_ref.dtype)

    # layer 1: one wide lane-dense matmul covering every submodel at once
    h = jnp.dot(x, w1_ref[...], preferred_element_type=jnp.float32)
    h = h + b1_ref[...]                      # (TB, H3P) + (1, H3P), f32
    h = jnp.maximum(h, 0.0)                  # ReLU on f32 accumulator (v5e-safe)
    hid_ref[...] = h.astype(hid_ref.dtype)

    # layer 2: block-diagonal (zero-padded) W2 -> one matmul for all logits.
    # NOTE: on the bf16 path this dot consumes a bf16-rounded copy of h while
    # hid_ref may store a differently-rounded value of the same accumulator;
    # documented internal inconsistency, well inside bf16 tolerance.
    o = jnp.dot(h.astype(w2_ref.dtype), w2_ref[...],
                preferred_element_type=jnp.float32)
    o = o + b2_ref[...]                      # (TB, O3P) + (1, O3P), f32
    out_ref[...] = o.astype(out_ref.dtype)


def _fused_forward(x, w1c, b1c, w2bd, b2c, out_dtype):
    """Single pallas_call running every submodel's 2-layer MLP."""
    B, in_dim = x.shape
    H3P = w1c.shape[1]        # lane-padded n_models * hidden
    O3P = w2bd.shape[1]       # lane-padded n_models * out

    # Tile only the batch axis (weights are tiny -> resident full-array blocks).
    #  * >= 2 grid points whenever B is large enough, so v7x's two TensorCores
    #    both get work on the "parallel" axis (serial loop on v5e/v6e).
    #  * TB a multiple of 16 so bf16 tiles pack full sublanes.
    #  * cap 1024: per-step working set is a few MiB even double-buffered, far
    #    under v7x's 64 MiB physical / 32 MiB default scoped VMEM, so no
    #    explicit vmem_limit_bytes is needed at these shapes.
    if B > 16:
        TB = min(1024, _round_up(pl.cdiv(B, 2), 16))
        TB = min(TB, B)
    else:
        TB = B
    grid = (pl.cdiv(B, TB),)

    out_itemsize = jnp.dtype(out_dtype).itemsize
    cost = pl.CostEstimate(
        flops=2 * B * (in_dim * H3P + H3P * O3P),
        transcendentals=0,
        bytes_accessed=(x.size * x.dtype.itemsize
                        + w1c.size * w1c.dtype.itemsize
                        + b1c.size * b1c.dtype.itemsize
                        + w2bd.size * w2bd.dtype.itemsize
                        + b2c.size * b2c.dtype.itemsize
                        + B * (H3P + O3P) * out_itemsize),
    )

    logits, hidden = pl.pallas_call(
        _fused_mlp_kernel,
        out_shape=(
            jax.ShapeDtypeStruct((B, O3P), out_dtype),   # fused lane-padded logits
            jax.ShapeDtypeStruct((B, H3P), out_dtype),   # fused lane-padded hidden
        ),
        grid=grid,
        in_specs=[
            pl.BlockSpec((TB, in_dim), lambda i: (i, 0)),   # x: batch-tiled
            pl.BlockSpec(w1c.shape, lambda i: (0, 0)),      # weights: resident
            pl.BlockSpec(b1c.shape, lambda i: (0, 0)),
            pl.BlockSpec(w2bd.shape, lambda i: (0, 0)),
            pl.BlockSpec(b2c.shape, lambda i: (0, 0)),
        ],
        out_specs=(
            pl.BlockSpec((TB, O3P), lambda i: (i, 0)),
            pl.BlockSpec((TB, H3P), lambda i: (i, 0)),
        ),
        # batch axis is embarrassingly parallel -> v7x megacore shards it;
        # no-op (sequential loop) on single-TC v5e/v6e.
        compiler_params=pltpu.CompilerParams(
            dimension_semantics=("parallel",),
        ),
        cost_estimate=cost,
    )(x, w1c, b1c, w2bd, b2c)
    return logits, hidden


# ----------------------------------------------------------------------------
# ParallelModel equivalent
# ----------------------------------------------------------------------------
class ParallelModel:
    """JAX/Pallas port of the PyTorch ParallelModel container.

    # TODO(synk): the PyTorch ParallelModel is generic over arbitrary
    # submodules; this port specializes the submodels to 2-layer MLPs so the
    # whole container can be fused into one Pallas kernel.
    """

    def __init__(self, *model_params, compute_dtype=None, output_dtype=None):
        self.models = list(model_params)
        assert len(self.models) >= 1
        in_dim, hidden_dim = self.models[0]["w1"].shape
        out_dim = self.models[0]["w2"].shape[1]
        for p in self.models:
            assert p["w1"].shape == (in_dim, hidden_dim)
            assert p["b1"].shape == (1, hidden_dim)
            assert p["w2"].shape == (hidden_dim, out_dim)
            assert p["b2"].shape == (1, out_dim)
        self.in_dim, self.hidden_dim, self.out_dim = in_dim, hidden_dim, out_dim
        self.compute_dtype = compute_dtype
        self.output_dtype = output_dtype

        n = len(self.models)
        H3, O3 = n * hidden_dim, n * out_dim
        # Lane-pad the fused widths to multiples of 128 so both output stores
        # are unmasked, lane-dense vst.  Padded columns have zero weights and
        # zero biases -> they compute to 0 and are simply ignored downstream.
        H3P, O3P = _round_up(H3, 128), _round_up(O3, 128)
        pdt = self.models[0]["w1"].dtype

        w1c = jnp.zeros((in_dim, H3P), pdt)          # [in,  H3P]
        b1c = jnp.zeros((1, H3P), jnp.float32)       # [1,   H3P]
        w2bd = jnp.zeros((H3P, O3P), pdt)            # [H3P, O3P] block-diagonal
        b2c = jnp.zeros((1, O3P), jnp.float32)       # [1,   O3P]
        for i, p in enumerate(self.models):
            hs, he = i * hidden_dim, (i + 1) * hidden_dim
            os_, oe = i * out_dim, (i + 1) * out_dim
            w1c = w1c.at[:, hs:he].set(p["w1"])
            b1c = b1c.at[:, hs:he].set(p["b1"].astype(jnp.float32))
            w2bd = w2bd.at[hs:he, os_:oe].set(p["w2"])
            b2c = b2c.at[:, os_:oe].set(p["b2"].astype(jnp.float32))

        if compute_dtype is not None:
            # bf16 matmul inputs are fine on v5e too: its MXU accepts bf16,
            # only bf16 VPU/EUP arithmetic is missing, and the bias + ReLU
            # epilogue runs on the f32 accumulator inside the kernel.
            w1c = w1c.astype(compute_dtype)
            w2bd = w2bd.astype(compute_dtype)
        self.w1c, self.b1c, self.w2bd, self.b2c = w1c, b1c, w2bd, b2c

    def __len__(self):
        return len(self.models)

    def fused_call(self, x):
        """Return the fused, lane-padded (logits_cat, hidden_cat) slabs.

        Prefer this when a downstream consumer can use the fused layout: the
        per-model slices in __call__ are materialized XLA copies that roughly
        double output HBM traffic for this memory-bound kernel.
        """
        out_dtype = self.output_dtype if self.output_dtype is not None else x.dtype
        return _fused_forward(x, self.w1c, self.b1c, self.w2bd, self.b2c, out_dtype)

    def __call__(self, x):
        logits_cat, hidden_cat = self.fused_call(x)
        n, H, O = len(self.models), self.hidden_dim, self.out_dim
        # TODO(synk): these per-model slices are XLA copies, kept only to match
        # the PyTorch `tuple(zip(*results))` API; use fused_call() to avoid them.
        logits = tuple(logits_cat[:, i * O:(i + 1) * O] for i in range(n))
        hidden = tuple(hidden_cat[:, i * H:(i + 1) * H] for i in range(n))
        return (logits, hidden)


# ----------------------------------------------------------------------------
# Deterministic parameter construction + pure-JAX reference
# ----------------------------------------------------------------------------
def make_mlp_params(key, in_dim, hidden_dim, out_dim, dtype=jnp.float32):
    k1, k2, k3, k4 = jax.random.split(key, 4)
    scale1 = 1.0 / jnp.sqrt(in_dim)
    scale2 = 1.0 / jnp.sqrt(hidden_dim)
    return {
        "w1": jax.random.uniform(k1, (in_dim, hidden_dim), dtype, -scale1, scale1),
        "b1": jax.random.uniform(k2, (1, hidden_dim), dtype, -scale1, scale1),
        "w2": jax.random.uniform(k3, (hidden_dim, out_dim), dtype, -scale2, scale2),
        "b2": jax.random.uniform(k4, (1, out_dim), dtype, -scale2, scale2),
    }


def _mlp_forward_ref(x, p):
    h = jnp.maximum(x @ p["w1"] + p["b1"], 0.0)
    return h @ p["w2"] + p["b2"], h


if __name__ == "__main__":
    key = jax.random.PRNGKey(0)
    k_in, k_m0, k_m1, k_m2 = jax.random.split(key, 4)

    # batch=40 exercises the >=2-point "parallel" grid (TB=32, grid=(2,))
    # with a partial last tile; feature dims stay tiny.
    batch, in_dim, hidden_dim, out_dim = 40, 32, 64, 16
    x = jax.random.normal(k_in, (batch, in_dim), jnp.float32)

    params = [
        make_mlp_params(k_m0, in_dim, hidden_dim, out_dim),
        make_mlp_params(k_m1, in_dim, hidden_dim, out_dim),
        make_mlp_params(k_m2, in_dim, hidden_dim, out_dim),
    ]

    # --- f32 path: matches the PyTorch reference tightly ---------------------
    model = ParallelModel(*params)
    outputs = jax.block_until_ready(model(x))

    # outputs is a tuple of 2 groups (logits-group, hidden-group),
    # each group a tuple with one tensor per submodel.
    assert len(outputs) == 2
    assert len(outputs[0]) == len(model) == 3
    assert outputs[0][0].shape == (batch, out_dim)
    assert outputs[1][0].shape == (batch, hidden_dim)

    for i, p in enumerate(params):
        ref_out, ref_hid = _mlp_forward_ref(x, p)
        assert jnp.allclose(outputs[0][i], ref_out, atol=1e-5, rtol=1e-5)
        assert jnp.allclose(outputs[1][i], ref_hid, atol=1e-5, rtol=1e-5)

    # --- bf16 MXU path (all generations): f32 accumulate + f32 epilogue ------
    model_bf16 = ParallelModel(*params, compute_dtype=jnp.bfloat16)
    outputs_bf16 = jax.block_until_ready(model_bf16(x))
    for i, p in enumerate(params):
        ref_out, ref_hid = _mlp_forward_ref(x, p)
        assert jnp.allclose(outputs_bf16[0][i], ref_out, atol=5e-2, rtol=5e-2)
        assert jnp.allclose(outputs_bf16[1][i], ref_hid, atol=5e-2, rtol=5e-2)

    # --- bf16 compute + bf16 outputs (halves the dominant output stream) -----
    model_bf16_out = ParallelModel(*params, compute_dtype=jnp.bfloat16,
                                   output_dtype=jnp.bfloat16)
    outputs_bf16_out = jax.block_until_ready(model_bf16_out(x))
    assert outputs_bf16_out[0][0].dtype == jnp.bfloat16
    for i, p in enumerate(params):
        ref_out, ref_hid = _mlp_forward_ref(x, p)
        assert jnp.allclose(outputs_bf16_out[0][i].astype(jnp.float32), ref_out,
                            atol=1e-1, rtol=1e-1)
        assert jnp.allclose(outputs_bf16_out[1][i].astype(jnp.float32), ref_hid,
                            atol=1e-1, rtol=1e-1)

    print("KERNEL_OK")
</pallas_src>

<mosaic_0001>
module attributes {stable_mosaic.version = 11 : i64} {
  func.func @_fused_mlp_kernel(%arg0: i32, %arg1: memref<32x32xf32, #tpu.memory_space<vmem>>, %arg2: memref<32x256xf32, #tpu.memory_space<vmem>>, %arg3: memref<1x256xf32, #tpu.memory_space<vmem>>, %arg4: memref<256x128xf32, #tpu.memory_space<vmem>>, %arg5: memref<1x128xf32, #tpu.memory_space<vmem>>, %arg6: memref<32x128xf32, #tpu.memory_space<vmem>>, %arg7: memref<32x256xf32, #tpu.memory_space<vmem>>) attributes {dimension_semantics = [#tpu.dimension_semantics<parallel>], iteration_bounds = array<i64: 2>, scalar_prefetch = 0 : i64, scratch_operands = 0 : i64, tpu.core_type = #tpu.core_type<tc>, window_params = [{transform_indices = @transform_0, window_bounds = array<i64: 32, 32>}, {pipeline_mode = #tpu.pipeline_mode<synchronous>, transform_indices = @transform_1, window_bounds = array<i64: 32, 256>}, {pipeline_mode = #tpu.pipeline_mode<synchronous>, transform_indices = @transform_2, window_bounds = array<i64: 1, 256>}, {pipeline_mode = #tpu.pipeline_mode<synchronous>, transform_indices = @transform_3, window_bounds = array<i64: 256, 128>}, {pipeline_mode = #tpu.pipeline_mode<synchronous>, transform_indices = @transform_4, window_bounds = array<i64: 1, 128>}, {transform_indices = @transform_5, window_bounds = array<i64: 32, 128>}, {transform_indices = @transform_6, window_bounds = array<i64: 32, 256>}]} {
    %c0 = arith.constant 0 : index
    %c0_0 = arith.constant 0 : index
    %0 = vector.load %arg1[%c0, %c0_0] : memref<32x32xf32, #tpu.memory_space<vmem>>, vector<32x32xf32>
    %c0_1 = arith.constant 0 : index
    %c0_2 = arith.constant 0 : index
    %1 = vector.load %arg2[%c0_1, %c0_2] : memref<32x256xf32, #tpu.memory_space<vmem>>, vector<32x256xf32>
    %cst = arith.constant dense<0.000000e+00> : vector<32x256xf32>
    %2 = tpu.matmul %0, %1, %cst {dimension_numbers = #tpu.dot_dimension_numbers<[1], [0], [0], [1], [0, 0, 1, 1], [], []>} : vector<32x32xf32>, vector<32x256xf32>, vector<32x256xf32> -> vector<32x256xf32>
    %c0_3 = arith.constant 0 : index
    %c0_4 = arith.constant 0 : index
    %3 = vector.load %arg3[%c0_3, %c0_4] : memref<1x256xf32, #tpu.memory_space<vmem>>, vector<1x256xf32>
    %4 = vector.broadcast %3 : vector<1x256xf32> to vector<32x256xf32>
    %5 = arith.addf %2, %4 : vector<32x256xf32>
    %cst_5 = arith.constant 0.000000e+00 : f32
    %6 = vector.broadcast %cst_5 : f32 to vector<32x256xf32>
    %7 = arith.maximumf %5, %6 : vector<32x256xf32>
    %c0_6 = arith.constant 0 : index
    %c0_7 = arith.constant 0 : index
    %8 = vector.load %arg7[%c0_6, %c0_7] : memref<32x256xf32, #tpu.memory_space<vmem>>, vector<32x256xf32>
    tpu.vector_store %arg7[%c0_6, %c0_7], %7 {strides = array<i32>} : memref<32x256xf32, #tpu.memory_space<vmem>>, vector<32x256xf32>,
    %c0_8 = arith.constant 0 : index
    %c0_9 = arith.constant 0 : index
    %9 = vector.load %arg4[%c0_8, %c0_9] : memref<256x128xf32, #tpu.memory_space<vmem>>, vector<256x128xf32>
    %cst_10 = arith.constant dense<0.000000e+00> : vector<32x128xf32>
    %10 = tpu.matmul %7, %9, %cst_10 {dimension_numbers = #tpu.dot_dimension_numbers<[1], [0], [0], [1], [0, 0, 1, 1], [], []>} : vector<32x256xf32>, vector<256x128xf32>, vector<32x128xf32> -> vector<32x128xf32>
    %c0_11 = arith.constant 0 : index
    %c0_12 = arith.constant 0 : index
    %11 = vector.load %arg5[%c0_11, %c0_12] : memref<1x128xf32, #tpu.memory_space<vmem>>, vector<1x128xf32>
    %12 = vector.broadcast %11 : vector<1x128xf32> to vector<32x128xf32>
    %13 = arith.addf %10, %12 : vector<32x128xf32>
    %c0_13 = arith.constant 0 : index
    %c0_14 = arith.constant 0 : index
    %14 = vector.load %arg6[%c0_13, %c0_14] : memref<32x128xf32, #tpu.memory_space<vmem>>, vector<32x128xf32>
    tpu.vector_store %arg6[%c0_13, %c0_14], %13 {strides = array<i32>} : memref<32x128xf32, #tpu.memory_space<vmem>>, vector<32x128xf32>,
    return
  }
  func.func @transform_0(%arg0: i32) -> (i32, i32) {
    %c0_i32 = arith.constant 0 : i32
    %c0_i32_0 = arith.constant 0 : i32
    return %arg0, %c0_i32 : i32, i32
  }
  func.func @transform_1(%arg0: i32) -> (i32, i32) {
    %c0_i32 = arith.constant 0 : i32
    %c0_i32_0 = arith.constant 0 : i32
    %c0_i32_1 = arith.constant 0 : i32
    return %c0_i32, %c0_i32_0 : i32, i32
  }
  func.func @transform_2(%arg0: i32) -> (i32, i32) {
    %c0_i32 = arith.constant 0 : i32
    %c0_i32_0 = arith.constant 0 : i32
    %c0_i32_1 = arith.constant 0 : i32
    return %c0_i32, %c0_i32_0 : i32, i32
  }
  func.func @transform_3(%arg0: i32) -> (i32, i32) {
    %c0_i32 = arith.constant 0 : i32
    %c0_i32_0 = arith.constant 0 : i32
    %c0_i32_1 = arith.constant 0 : i32
    return %c0_i32, %c0_i32_0 : i32, i32
  }
  func.func @transform_4(%arg0: i32) -> (i32, i32) {
    %c0_i32 = arith.constant 0 : i32
    %c0_i32_0 = arith.constant 0 : i32
    %c0_i32_1 = arith.constant 0 : i32
    return %c0_i32, %c0_i32_0 : i32, i32
  }
  func.func @transform_5(%arg0: i32) -> (i32, i32) {
    %c0_i32 = arith.constant 0 : i32
    %c0_i32_0 = arith.constant 0 : i32
    return %arg0, %c0_i32 : i32, i32
  }
  func.func @transform_6(%arg0: i32) -> (i32, i32) {
    %c0_i32 = arith.constant 0 : i32
    %c0_i32_0 = arith.constant 0 : i32
    return %arg0, %c0_i32 : i32, i32
  }
}

</mosaic_0001>

<llo_original>
// kernel: tpu_custom_call.1
$region0: #{tpu_custom_call.1}
  #allocation0 [shape = 'u32[]', space=smem, size = 0x4, offset = 0x4, fixed_abs, tag = 'smem constant byte address 0x4 - core index']
  #allocation1 [shape = 'u32[72,128]{1,0:T(1,128)}', space=vmem, size = 0x9000, scoped, tag = 'internal scratch']
  %s0 = inlined_call_operand.vmem [shape: f32[40,32], index: 0, kind: input, shape index: {}]
  %s1 = inlined_call_operand.vmem [shape: f32[32,256], index: 1, kind: input, shape index: {}]
  %s2 = inlined_call_operand.vmem [shape: f32[1,256], index: 2, kind: input, shape index: {}]
  %s3 = inlined_call_operand.hbm [shape: f32[256,128], index: 3, kind: input, shape index: {}]
  %s4 = inlined_call_operand.vmem [shape: f32[1,128], index: 4, kind: input, shape index: {}]
  %s5 = inlined_call_operand.hbm [shape: f32[40,128], index: 5, kind: output, shape index: {0}]
  %s6 = inlined_call_operand.hbm [shape: f32[40,256], index: 6, kind: output, shape index: {1}]
  %7 = xla_tuple %s5, %s6
  %s8 = sld [smem:[#allocation0]]
  $region65: #{tpu_custom_call.1} parent=0
    _
  %s10 = ssub.s32 1, %s8
  %s11 = scalar_select 0, %s10, %s8
  $region1: #{tpu_custom_call.1} parent=0
    #allocation2 [shape = 'u8[131072]{0}', space=vmem, size = 0x20000, scoped, tag = 'input window, operand 3, single buffered']
    #allocation3 [shape = 's32[2]{0}', space=sflag, size = 0x8, scoped, tag = 'scoped memory for tpu_custom_call.1']
    #allocation4 [shape = 's32[2]{0}', space=sflag, size = 0x8, scoped, tag = 'scoped memory for tpu_custom_call.1']
    #allocation5 [shape = 'u8[32768]{0}', space=vmem, size = 0x8000, scoped, tag = 'output window, operand 0']
    #allocation6 [shape = 'u8[65536]{0}', space=vmem, size = 0x10000, scoped, tag = 'output window, operand 1']
    #allocation7 [shape = 's32[2]{0}', space=sflag, size = 0x8, scoped, tag = 'scoped memory for tpu_custom_call.1']
    %12 = vsyncpa [#allocation3], 0
    %13 = vsyncpa [#allocation4], 0
    %s14 = scalar_lea.sflag [#allocation4], 1
    %15 = vsyncpa %s14, 0
    %16 = vsyncpa [#allocation7], 0
    %s17 = scalar_lea.sflag [#allocation7], 1
    %18 = vsyncpa %s17, 0
    loop: start=0, step=1, limit=4
    $region2: #{tpu_custom_call.1} parent=1 // loop_pre_header
      _
    $region3: #{tpu_custom_call.1} parent=1 // loop_header
      %s20 = sphi 0, %s24
      %p21 = scmp.ge.s32.totalorder %s20, 4
      %s30 = sphi 0, %s32
      %s33 = sphi 0, %s30
      %s34 = sphi 0, %s33
      %s50 = sphi 0, %s34
      %s54 = sphi 0, %s54
      %s56 = sphi 0, %s54
      %s57 = sphi 0, %s56
      %s71 = sphi 0, %s57
      %s75 = sphi 0, %s75
      %s77 = sphi 0, %s75
      %s78 = sphi 0, %s77
      %s92 = sphi 0, %s78
      %s96 = sphi 0, %s96
      %s98 = sphi 0, %s96
      %s99 = sphi 0, %s98
      %s113 = sphi 0, %s99
      %s117 = sphi 0, %s117
      %s119 = sphi 0, %s117
      %s120 = sphi 0, %s119
      %s134 = sphi 0, %s120
      %s140 = sphi 0, %s142
      %s143 = sphi 0, %s140
      %s144 = sphi 0, %s143
      %s160 = sphi 0, %s144
      %s166 = sphi 0, %s168
      %s169 = sphi 0, %s166
      %s170 = sphi 0, %s169
      %s186 = sphi 0, %s170
    $region4: #{tpu_custom_call.1} parent=1 // loop_header_branch
      %23 = sbr.rel (%p21) target = $region8
    $region5: #{tpu_custom_call.1} parent=1 // loop_body
      %s25 = ssub.s32 %s20, 1
      %s26 = ssub.s32 %s20, 2
      %s27 = sadd.s32 %s20, 1
      %s28 = ssub.s32 %s20, %s27
      %p29 = scmp.eq.s32.totalorder %s28, 0
      %s31 = sadd.s32 %s30, 1
      %s32 = scalar_select %p29, %s30, %s31
      %p35 = pneg %p29
      %p36 = scmp.eq.s32.totalorder %s20, 1
      %p37 = por %p35, %p36
      %p38 = scmp.ne.s32.totalorder %s30, %s33
      %p39 = scmp.eq.s32.totalorder %s20, 0
      %p40 = por %p38, %p39
      %p41 = scmp.ne.s32.totalorder %s30, %s33
      %p42 = scmp.eq.s32.totalorder %s25, 1
      %p43 = por %p41, %p42
      %p44 = scmp.ne.s32.totalorder %s33, %s34
      %p45 = scmp.eq.s32.totalorder %s25, 0
      %p46 = por %p44, %p45
      %p47 = scmp.ne.s32.totalorder %s33, %s34
      %p48 = scmp.eq.s32.totalorder %s26, 1
      %p49 = por %p47, %p48
      %p51 = scmp.ne.s32.totalorder %s34, %s50
      %p52 = scmp.eq.s32.totalorder %s26, 0
      %p53 = por %p51, %p52
      %s55 = sadd.s32 %s54, 1
      %p58 = scmp.eq.s32.totalorder %s20, 1
      %p59 = scmp.ne.s32.totalorder %s54, %s56
      %p60 = scmp.eq.s32.totalorder %s20, 0
      %p61 = por %p59, %p60
      %p62 = scmp.ne.s32.totalorder %s54, %s56
      %p63 = scmp.eq.s32.totalorder %s25, 1
      %p64 = por %p62, %p63
      %p65 = scmp.ne.s32.totalorder %s56, %s57
      %p66 = scmp.eq.s32.totalorder %s25, 0
      %p67 = por %p65, %p66
      %p68 = scmp.ne.s32.totalorder %s56, %s57
      %p69 = scmp.eq.s32.totalorder %s26, 1
      %p70 = por %p68, %p69
      %p72 = scmp.ne.s32.totalorder %s57, %s71
      %p73 = scmp.eq.s32.totalorder %s26, 0
      %p74 = por %p72, %p73
      %s76 = sadd.s32 %s75, 1
      %p79 = scmp.eq.s32.totalorder %s20, 1
      %p80 = scmp.ne.s32.totalorder %s75, %s77
      %p81 = scmp.eq.s32.totalorder %s20, 0
      %p82 = por %p80, %p81
      %p83 = scmp.ne.s32.totalorder %s75, %s77
      %p84 = scmp.eq.s32.totalorder %s25, 1
      %p85 = por %p83, %p84
      %p86 = scmp.ne.s32.totalorder %s77, %s78
      %p87 = scmp.eq.s32.totalorder %s25, 0
      %p88 = por %p86, %p87
      %p89 = scmp.ne.s32.totalorder %s77, %s78
      %p90 = scmp.eq.s32.totalorder %s26, 1
      %p91 = por %p89, %p90
      %p93 = scmp.ne.s32.totalorder %s78, %s92
      %p94 = scmp.eq.s32.totalorder %s26, 0
      %p95 = por %p93, %p94
      %s97 = sadd.s32 %s96, 1
      %p100 = scmp.eq.s32.totalorder %s20, 1
      %p101 = scmp.ne.s32.totalorder %s96, %s98
      %p102 = scmp.eq.s32.totalorder %s20, 0
      %p103 = por %p101, %p102
      %p104 = scmp.ne.s32.totalorder %s96, %s98
      %p105 = scmp.eq.s32.totalorder %s25, 1
      %p106 = por %p104, %p105
      %p107 = scmp.ne.s32.totalorder %s98, %s99
      %p108 = scmp.eq.s32.totalorder %s25, 0
      %p109 = por %p107, %p108
      %p110 = scmp.ne.s32.totalorder %s98, %s99
      %p111 = scmp.eq.s32.totalorder %s26, 1
      %p112 = por %p110, %p111
      %p114 = scmp.ne.s32.totalorder %s99, %s113
      %p115 = scmp.eq.s32.totalorder %s26, 0
      %p116 = por %p114, %p115
      %s118 = sadd.s32 %s117, 1
      %p121 = scmp.eq.s32.totalorder %s20, 1
      %p122 = scmp.ne.s32.totalorder %s117, %s119
      %p123 = scmp.eq.s32.totalorder %s20, 0
      %p124 = por %p122, %p123
      %p125 = scmp.ne.s32.totalorder %s117, %s119
      %p126 = scmp.eq.s32.totalorder %s25, 1
      %p127 = por %p125, %p126
      %p128 = scmp.ne.s32.totalorder %s119, %s120
      %p129 = scmp.eq.s32.totalorder %s25, 0
      %p130 = por %p128, %p129
      %p131 = scmp.ne.s32.totalorder %s119, %s120
      %p132 = scmp.eq.s32.totalorder %s26, 1
      %p133 = por %p131, %p132
      %p135 = scmp.ne.s32.totalorder %s120, %s134
      %p136 = scmp.eq.s32.totalorder %s26, 0
      %p137 = por %p135, %p136
      %s138 = ssub.s32 %s20, %s27
      %p139 = scmp.eq.s32.totalorder %s138, 0
      %s141 = sadd.s32 %s140, 1
      %s142 = scalar_select %p139, %s140, %s141
      %p145 = pneg %p139
      %p146 = scmp.eq.s32.totalorder %s20, 1
      %p147 = por %p145, %p146
      %p148 = scmp.ne.s32.totalorder %s140, %s143
      %p149 = scmp.eq.s32.totalorder %s20, 0
      %p150 = por %p148, %p149
      %p151 = scmp.ne.s32.totalorder %s140, %s143
      %p152 = scmp.eq.s32.totalorder %s25, 1
      %p153 = por %p151, %p152
      %p154 = scmp.ne.s32.totalorder %s143, %s144
      %p155 = scmp.eq.s32.totalorder %s25, 0
      %p156 = por %p154, %p155
      %p157 = scmp.ne.s32.totalorder %s143, %s144
      %p158 = scmp.eq.s32.totalorder %s26, 1
      %p159 = por %p157, %p158
      %p161 = scmp.ne.s32.totalorder %s144, %s160
      %p162 = scmp.eq.s32.totalorder %s26, 0
      %p163 = por %p161, %p162
      %s164 = ssub.s32 %s20, %s27
      %p165 = scmp.eq.s32.totalorder %s164, 0
      %s167 = sadd.s32 %s166, 1
      %s168 = scalar_select %p165, %s166, %s167
      %p171 = pneg %p165
      %p172 = scmp.eq.s32.totalorder %s20, 1
      %p173 = por %p171, %p172
      %p174 = scmp.ne.s32.totalorder %s166, %s169
      %p175 = scmp.eq.s32.totalorder %s20, 0
      %p176 = por %p174, %p175
      %p177 = scmp.ne.s32.totalorder %s166, %s169
      %p178 = scmp.eq.s32.totalorder %s25, 1
      %p179 = por %p177, %p178
      %p180 = scmp.ne.s32.totalorder %s169, %s170
      %p181 = scmp.eq.s32.totalorder %s25, 0
      %p182 = por %p180, %p181
      %p183 = scmp.ne.s32.totalorder %s169, %s170
      %p184 = scmp.eq.s32.totalorder %s26, 1
      %p185 = por %p183, %p184
      %p187 = scmp.ne.s32.totalorder %s170, %s186
      %p188 = scmp.eq.s32.totalorder %s26, 0
      %p189 = por %p187, %p188
      %p190 = scmp.le.s32.totalorder 1, %s20
      %p191 = scmp.lt.s32.totalorder %s20, 3
      %p192 = pnand %p190, %p191
      %p193 = pneg %p192
      // Predicated region
      $region9: #{tpu_custom_call.1} parent=5 // pred_check
        _
      $region10: #{tpu_custom_call.1} parent=5 // pred_check_branch
        %195 = sbr.rel (%p192) target = $region12
      $region11: #{tpu_custom_call.1} parent=5 // pred_region
        %s196 = ssub.s32 %s20, 1
        // Predicated region
        $region13: #{tpu_custom_call.1} parent=11 // pred_check
          %p197 = pneg %p67
        $region14: #{tpu_custom_call.1} parent=11 // pred_check_branch
          %199 = sbr.rel (%p197) target = $region16
        $region15: #{tpu_custom_call.1} parent=11 // pred_region
          _
        $region16: #{tpu_custom_call.1} parent=11 // pred_fallthru
          _
        // Predicated region
        $region17: #{tpu_custom_call.1} parent=11 // pred_check
          %p200 = pneg %p88
        $region18: #{tpu_custom_call.1} parent=11 // pred_check_branch
          %202 = sbr.rel (%p200) target = $region20
        $region19: #{tpu_custom_call.1} parent=11 // pred_region
          _
        $region20: #{tpu_custom_call.1} parent=11 // pred_fallthru
          _
        // Predicated region
        $region21: #{tpu_custom_call.1} parent=11 // pred_check
          %p203 = pneg %p109
        $region22: #{tpu_custom_call.1} parent=11 // pred_check_branch
          %205 = sbr.rel (%p203) target = $region24
        $region23: #{tpu_custom_call.1} parent=11 // pred_region
          %207 = vsyncadd [#allocation3], 0
          %s208 = sshll.u32 %s3, 4
          %s209 = int_to_ptr.hbm [resolvable:$true] %s208
          %s210 = sshll.u32 [#allocation2], 4
          %s211 = int_to_ptr.vmem [resolvable:$true] %s210
          %216 = dma.hbm_to_vmem [thread:$0]  %s209, 4096, %s211, [#allocation3], 128, 128, 8
        $region24: #{tpu_custom_call.1} parent=11 // pred_fallthru
          _
        // Predicated region
        $region25: #{tpu_custom_call.1} parent=11 // pred_check
          %p217 = pneg %p130
        $region26: #{tpu_custom_call.1} parent=11 // pred_check_branch
          %219 = sbr.rel (%p217) target = $region28
        $region27: #{tpu_custom_call.1} parent=11 // pred_region
          _
        $region28: #{tpu_custom_call.1} parent=11 // pred_fallthru
          _
      $region12: #{tpu_custom_call.1} parent=5 // pred_fallthru
        _
      %p220 = scmp.lt.s32.totalorder %s20, 2
      // Predicated region
      $region29: #{tpu_custom_call.1} parent=5 // pred_check
        %p221 = pneg %p220
      $region30: #{tpu_custom_call.1} parent=5 // pred_check_branch
        %223 = sbr.rel (%p221) target = $region32
      $region31: #{tpu_custom_call.1} parent=5 // pred_region
        // Predicated region
        $region33: #{tpu_custom_call.1} parent=31 // pred_check
          %p224 = pneg %p40
        $region34: #{tpu_custom_call.1} parent=31 // pred_check_branch
          %226 = sbr.rel (%p224) target = $region36
        $region35: #{tpu_custom_call.1} parent=31 // pred_region
          %s227 = smul.u32 4, %s20
          %s228 = ssub.s32 5, %s227
          %p229 = scmp.lt.s32.totalorder %s228, 4
          %s230 = scalar_select %p229, %s228, 4
          %s231 = smul.u32 8, %s230
          %p232 = scmp.lt.s32.totalorder %s227, 4
          %s233 = scalar_select %p232, %s227, 4
          %s234 = smul.addr %s233, 8
          %s235 = scalar_lea.vmem %s0, %s234
          %s236 = smul.u32 4, %s20
          %s237 = ssub.s32 5, %s236
          %p238 = scmp.lt.s32.totalorder %s237, 4
          %s239 = scalar_select %p238, %s237, 4
          %s240 = smul.u32 8, %s239
        $region36: #{tpu_custom_call.1} parent=31 // pred_fallthru
          _
      $region32: #{tpu_custom_call.1} parent=5 // pred_fallthru
        _
      %p241 = scmp.le.s32.totalorder 1, %s20
      %p242 = scmp.lt.s32.totalorder %s20, 3
      %p243 = pnand %p241, %p242
      %p244 = pneg %p243
      // Predicated region
      $region37: #{tpu_custom_call.1} parent=5 // pred_check
        _
      $region38: #{tpu_custom_call.1} parent=5 // pred_check_branch
        %246 = sbr.rel (%p243) target = $region40
      $region39: #{tpu_custom_call.1} parent=5 // pred_region
        %s247 = ssub.s32 %s20, 1
        // Predicated region
        $region41: #{tpu_custom_call.1} parent=39 // pred_check
          %p248 = pneg %p109
        $region42: #{tpu_custom_call.1} parent=39 // pred_check_branch
          %250 = sbr.rel (%p248) target = $region44
        $region43: #{tpu_custom_call.1} parent=39 // pred_region
          %252 = dma.done [#allocation3], 4096
        $region44: #{tpu_custom_call.1} parent=39 // pred_fallthru
          _
        %s253 = smul.u32 4, %s25
        %s254 = ssub.s32 5, %s253
        %p255 = scmp.lt.s32.totalorder %s254, 4
        %s256 = scalar_select %p255, %s254, 4
        %s257 = smul.u32 8, %s256
        %p258 = scmp.lt.s32.totalorder %s253, 4
        %s259 = scalar_select %p258, %s253, 4
        %s260 = smul.addr %s259, 8
        %s261 = scalar_lea.vmem %s0, %s260
        %p262 = pneg %p46
        %p263 = pneg %p43
        %p264 = pneg %p67
        %p265 = pneg %p64
        %p266 = pneg %p88
        %p267 = pneg %p85
        %p268 = pneg %p109
        %p269 = pneg %p106
        %p270 = pneg %p130
        %p271 = pneg %p127
        %p272 = pneg %p156
        %p273 = pneg %p153
        %s274 = sand.u32 %s143, 1
        %s275 = scalar_lea.sflag [#allocation4], %s274
        %s276 = sand.u32 %s143, 1
        %s277 = smul.addr %s276, 32
        %s278 = scalar_lea.vmem [#allocation5], %s277
        %p279 = pneg %p182
        %p280 = pneg %p179
        %s281 = sand.u32 %s169, 1
        %s282 = scalar_lea.sflag [#allocation7], %s281
        %s283 = sand.u32 %s169, 1
        %s284 = smul.addr %s283, 64
        %s285 = scalar_lea.vmem [#allocation6], %s284
        %s286 = smul.u32 4, %s25
        %s287 = ssub.s32 5, %s286
        %p288 = scmp.lt.s32.totalorder %s287, 4
        %s289 = scalar_select %p288, %s287, 4
        %s290 = smul.u32 8, %s289
        %p291 = scmp.lt.s32.totalorder %s286, 4
        %s292 = scalar_select %p291, %s286, 4
        %s293 = smul.addr %s292, 8
        %s294 = scalar_lea.vmem %s0, %s293
        %s295 = smul.u32 4, %s25
        %s296 = ssub.s32 5, %s295
        %p297 = scmp.lt.s32.totalorder %s296, 4
        %s298 = scalar_select %p297, %s296, 4
        %s299 = smul.u32 8, %s298
        %s300 = smul.u32 4, %s25
        %s301 = ssub.s32 5, %s300
        %p302 = scmp.lt.s32.totalorder %s301, 4
        %s303 = scalar_select %p302, %s301, 4
        %s304 = smul.u32 8, %s303
        %s305 = smul.u32 4, %s25
        %s306 = ssub.s32 5, %s305
        %p307 = scmp.lt.s32.totalorder %s306, 4
        %s308 = scalar_select %p307, %s306, 4
        %s309 = smul.u32 8, %s308
        %s310 = smul.u32 %s309, 2
        %v311 = vld [vmem:[%s294] sm:$0xff]
        %v312 = vld [vmem:[%s294 + $0x8] sm:$0xff]
        %v313 = vld [vmem:[%s294 + $0x10] sm:$0xff]
        %v314 = vld [vmem:[%s294 + $0x18] sm:$0xff]
        %v315 = vld [vmem:[%s1] sm:$0xff]
        %v316 = vld [vmem:[%s1 + $0x8] sm:$0xff]
        %v317 = vld [vmem:[%s1 + $0x10] sm:$0xff]
        %v318 = vld [vmem:[%s1 + $0x18] sm:$0xff]
        %v319 = vld [vmem:[%s1 + $0x20] sm:$0xff]
        %v320 = vld [vmem:[%s1 + $0x28] sm:$0xff]
        %v321 = vld [vmem:[%s1 + $0x30] sm:$0xff]
        %v322 = vld [vmem:[%s1 + $0x38] sm:$0xff]
        %v323 = vld [vmem:[%s2] sm:$0x3]
        %v325 = vperm.slane %v323, 0
        %v326 = vperm.slane %v323, 1
        %vm329 = vcmask 261120
        %v331 = vsel %vm329, %v311, 0
        %v334 = vsel %vm329, %v312, 0
        %v337 = vsel %vm329, %v313, 0
        %v340 = vsel %vm329, %v314, 0
        %342 = vmatpush.msra.mxu0 0.0
        %343 = vmatpush.msra.mxu0 0.0
        %344 = vmatpush.msra.mxu0 0.0
        %345 = vmatpush.msra.mxu0 0.0
        %346 = vmatpush.msra.mxu0 0.0
        %347 = vmatpush.msra.mxu0 0.0
        %348 = vmatpush.msra.mxu0 0.0
        %349 = vmatpush.msra.mxu0 0.0
        %350 = vmatpush.msra.mxu0 0.0
        %351 = vmatpush.msra.mxu0 0.0
        %352 = vmatpush.msra.mxu0 0.0
        %353 = vmatpush.msra.mxu0 0.0
        %354 = vmatpush.msra.mxu0 %v321
        %355 = vmatpush.msra.mxu0 %v319
        %356 = vmatpush.msra.mxu0 %v317
        %357 = vmatpush.msra.mxu0 %v315
        %358 = vmatmul.f32.gmra.mxu0 %v331
        %v359 = vpop.f32.mrf.mxu0
        %v360 = vadd.f32 %v325, %v359
        %361 = vmatmul.f32.gmra.mxu0 %v334
        %v362 = vpop.f32.mrf.mxu0
        %v363 = vadd.f32 %v325, %v362
        %364 = vmatmul.f32.gmra.mxu0 %v337
        %v365 = vpop.f32.mrf.mxu0
        %v366 = vadd.f32 %v325, %v365
        %367 = vmatmul.f32.gmra.mxu0 %v340
        %v368 = vpop.f32.mrf.mxu0
        %v369 = vadd.f32 %v325, %v368
        %370 = vdwg.mxu0
        %371 = vmatpush.msra.mxu0 0.0
        %372 = vmatpush.msra.mxu0 0.0
        %373 = vmatpush.msra.mxu0 0.0
        %374 = vmatpush.msra.mxu0 0.0
        %375 = vmatpush.msra.mxu0 0.0
        %376 = vmatpush.msra.mxu0 0.0
        %377 = vmatpush.msra.mxu0 0.0
        %378 = vmatpush.msra.mxu0 0.0
        %379 = vmatpush.msra.mxu0 0.0
        %380 = vmatpush.msra.mxu0 0.0
        %381 = vmatpush.msra.mxu0 0.0
        %382 = vmatpush.msra.mxu0 0.0
        %383 = vmatpush.msra.mxu0 %v322
        %384 = vmatpush.msra.mxu0 %v320
        %385 = vmatpush.msra.mxu0 %v318
        %386 = vmatpush.msra.mxu0 %v316
        %387 = vmatmul.f32.gmra.mxu0 %v331
        %v388 = vpop.f32.mrf.mxu0
        %v389 = vadd.f32 %v326, %v388
        %390 = vmatmul.f32.gmra.mxu0 %v334
        %v391 = vpop.f32.mrf.mxu0
        %v392 = vadd.f32 %v326, %v391
        %393 = vmatmul.f32.gmra.mxu0 %v337
        %v394 = vpop.f32.mrf.mxu0
        %v395 = vadd.f32 %v326, %v394
        %396 = vmatmul.f32.gmra.mxu0 %v340
        %v397 = vpop.f32.mrf.mxu0
        %v398 = vadd.f32 %v326, %v397
        %399 = vdwg.mxu0
        %v400 = vmax.f32 %v360, 0.0
        %v401 = vmax.f32 %v389, 0.0
        %v402 = vmax.f32 %v363, 0.0
        %v403 = vmax.f32 %v392, 0.0
        %v404 = vmax.f32 %v366, 0.0
        %v405 = vmax.f32 %v395, 0.0
        %v406 = vmax.f32 %v369, 0.0
        %v407 = vmax.f32 %v398, 0.0
        %408 = vst [vmem:[%s285] sm:$0xff] %v400
        %409 = vst [vmem:[%s285 + $0x8] sm:$0xff] %v401
        %410 = vst [vmem:[%s285 + $0x10] sm:$0xff] %v402
        %411 = vst [vmem:[%s285 + $0x18] sm:$0xff] %v403
        %412 = vst [vmem:[%s285 + $0x20] sm:$0xff] %v404
        %413 = vst [vmem:[%s285 + $0x28] sm:$0xff] %v405
        %414 = vst [vmem:[%s285 + $0x30] sm:$0xff] %v406
        %415 = vst [vmem:[%s285 + $0x38] sm:$0xff] %v407
        %v416 = vld [vmem:[#allocation2] sm:$0xff]
        %v417 = vld [vmem:[#allocation2 + $0x8] sm:$0xff]
        %v418 = vld [vmem:[#allocation2 + $0x10] sm:$0xff]
        %v419 = vld [vmem:[#allocation2 + $0x18] sm:$0xff]
        %v420 = vld [vmem:[#allocation2 + $0x20] sm:$0xff]
        %v421 = vld [vmem:[#allocation2 + $0x28] sm:$0xff]
        %v422 = vld [vmem:[#allocation2 + $0x30] sm:$0xff]
        %v423 = vld [vmem:[#allocation2 + $0x38] sm:$0xff]
        %v424 = vld [vmem:[#allocation2 + $0x40] sm:$0xff]
        %v425 = vld [vmem:[#allocation2 + $0x48] sm:$0xff]
        %v426 = vld [vmem:[#allocation2 + $0x50] sm:$0xff]
        %v427 = vld [vmem:[#allocation2 + $0x58] sm:$0xff]
        %v428 = vld [vmem:[#allocation2 + $0x60] sm:$0xff]
        %v429 = vld [vmem:[#allocation2 + $0x68] sm:$0xff]
        %v430 = vld [vmem:[#allocation2 + $0x70] sm:$0xff]
        %v431 = vld [vmem:[#allocation2 + $0x78] sm:$0xff]
        %v432 = vld [vmem:[#allocation2 + $0x80] sm:$0xff]
        %v433 = vld [vmem:[#allocation2 + $0x88] sm:$0xff]
        %v434 = vld [vmem:[#allocation2 + $0x90] sm:$0xff]
        %v435 = vld [vmem:[#allocation2 + $0x98] sm:$0xff]
        %v436 = vld [vmem:[#allocation2 + $0xa0] sm:$0xff]
        %v437 = vld [vmem:[#allocation2 + $0xa8] sm:$0xff]
        %v438 = vld [vmem:[#allocation2 + $0xb0] sm:$0xff]
        %v439 = vld [vmem:[#allocation2 + $0xb8] sm:$0xff]
        %v440 = vld [vmem:[#allocation2 + $0xc0] sm:$0xff]
        %v441 = vld [vmem:[#allocation2 + $0xc8] sm:$0xff]
        %v442 = vld [vmem:[#allocation2 + $0xd0] sm:$0xff]
        %v443 = vld [vmem:[#allocation2 + $0xd8] sm:$0xff]
        %v444 = vld [vmem:[#allocation2 + $0xe0] sm:$0xff]
        %v445 = vld [vmem:[#allocation2 + $0xe8] sm:$0xff]
        %v446 = vld [vmem:[#allocation2 + $0xf0] sm:$0xff]
        %v447 = vld [vmem:[#allocation2 + $0xf8] sm:$0xff]
        %v448 = vld [vmem:[%s4] sm:$0x1]
        %v450 = vperm.slane %v448, 0
        %452 = vmatpush.msra.mxu0 %v431
        %453 = vmatpush.msra.mxu0 %v430
        %454 = vmatpush.msra.mxu0 %v429
        %455 = vmatpush.msra.mxu0 %v428
        %456 = vmatpush.msra.mxu0 %v427
        %457 = vmatpush.msra.mxu0 %v426
        %458 = vmatpush.msra.mxu0 %v425
        %459 = vmatpush.msra.mxu0 %v424
        %460 = vmatpush.msra.mxu0 %v423
        %461 = vmatpush.msra.mxu0 %v422
        %462 = vmatpush.msra.mxu0 %v421
        %463 = vmatpush.msra.mxu0 %v420
        %464 = vmatpush.msra.mxu0 %v419
        %465 = vmatpush.msra.mxu0 %v418
        %466 = vmatpush.msra.mxu0 %v417
        %467 = vmatpush.msra.mxu0 %v416
        %468 = vmatmul.f32.gmra.mxu0 %v400
        %v469 = vpop.f32.mrf.mxu0
        %v470 = vadd.f32 %v450, %v469
        %471 = vmatmul.f32.gmra.mxu0 %v402
        %v472 = vpop.f32.mrf.mxu0
        %v473 = vadd.f32 %v450, %v472
        %474 = vmatmul.f32.gmra.mxu0 %v404
        %v475 = vpop.f32.mrf.mxu0
        %v476 = vadd.f32 %v450, %v475
        %477 = vmatmul.f32.gmra.mxu0 %v406
        %v478 = vpop.f32.mrf.mxu0
        %v479 = vadd.f32 %v450, %v478
        %480 = vdwg.mxu0
        %481 = vmatpush.msra.mxu0 %v447
        %482 = vmatpush.msra.mxu0 %v446
        %483 = vmatpush.msra.mxu0 %v445
        %484 = vmatpush.msra.mxu0 %v444
        %485 = vmatpush.msra.mxu0 %v443
        %486 = vmatpush.msra.mxu0 %v442
        %487 = vmatpush.msra.mxu0 %v441
        %488 = vmatpush.msra.mxu0 %v440
        %489 = vmatpush.msra.mxu0 %v439
        %490 = vmatpush.msra.mxu0 %v438
        %491 = vmatpush.msra.mxu0 %v437
        %492 = vmatpush.msra.mxu0 %v436
        %493 = vmatpush.msra.mxu0 %v435
        %494 = vmatpush.msra.mxu0 %v434
        %495 = vmatpush.msra.mxu0 %v433
        %496 = vmatpush.msra.mxu0 %v432
        %497 = vmatmul.f32.gmra.mxu0 %v401
        %v498 = vpop.f32.mrf.mxu0
        %v499 = vadd.f32 %v470, %v498
        %500 = vmatmul.f32.gmra.mxu0 %v403
        %v501 = vpop.f32.mrf.mxu0
        %v502 = vadd.f32 %v473, %v501
        %503 = vmatmul.f32.gmra.mxu0 %v405
        %v504 = vpop.f32.mrf.mxu0
        %v505 = vadd.f32 %v476, %v504
        %506 = vmatmul.f32.gmra.mxu0 %v407
        %v507 = vpop.f32.mrf.mxu0
        %v508 = vadd.f32 %v479, %v507
        %509 = vdwg.mxu0
        %510 = vst [vmem:[%s278] sm:$0xff] %v499
        %511 = vst [vmem:[%s278 + $0x8] sm:$0xff] %v502
        %512 = vst [vmem:[%s278 + $0x10] sm:$0xff] %v505
        %513 = vst [vmem:[%s278 + $0x18] sm:$0xff] %v508
        %s514 = sand.u32 %s143, 1
        %s515 = scalar_lea.sflag [#allocation4], %s514
        %s516 = sand.u32 %s143, 1
        %s517 = smul.addr %s516, 32
        %s518 = scalar_lea.vmem [#allocation5], %s517
        %s519 = sand.u32 %s169, 1
        %s520 = scalar_lea.sflag [#allocation7], %s519
        %s521 = sand.u32 %s169, 1
        %s522 = smul.addr %s521, 64
        %s523 = scalar_lea.vmem [#allocation6], %s522
        // Predicated region
        $region45: #{tpu_custom_call.1} parent=39 // pred_check
          %p524 = pneg %p153
        $region46: #{tpu_custom_call.1} parent=39 // pred_check_branch
          %526 = sbr.rel (%p524) target = $region48
        $region47: #{tpu_custom_call.1} parent=39 // pred_region
          %s527 = smul.u32 4, %s25
          %s528 = ssub.s32 5, %s527
          %p529 = scmp.lt.s32.totalorder %s528, 4
          %s530 = scalar_select %p529, %s528, 4
          %s531 = smul.u32 8, %s530
          %s532 = ssub.s32 32, %s531
          %s533 = sshll.u32 %s532, 4
          %534 = vsyncadd %s515, %s533
          %p535 = scmp.ne.s32.totalorder 0, %s531
          %s536 = smul.addr %s527, 8
          %s537 = scalar_lea.hbm %s5, %s536
          %s538 = smul.u32 8, %s530
          %s539 = sshll.u32 %s518, 4
          %s540 = int_to_ptr.vmem [resolvable:$true] %s539
          %s541 = sshll.u32 %s537, 4
          %s542 = int_to_ptr.hbm [resolvable:$true] %s541
          %s543 = sshll.u32 %s538, 4
          %547 = dma.vmem_to_hbm [thread:$0]  (%p535), %s540, %s543, %s542, %s515, 128, 128, 8
        $region48: #{tpu_custom_call.1} parent=39 // pred_fallthru
          _
        // Predicated region
        $region49: #{tpu_custom_call.1} parent=39 // pred_check
          %p548 = pneg %p179
        $region50: #{tpu_custom_call.1} parent=39 // pred_check_branch
          %550 = sbr.rel (%p548) target = $region52
        $region51: #{tpu_custom_call.1} parent=39 // pred_region
          %s551 = smul.u32 4, %s25
          %s552 = ssub.s32 5, %s551
          %p553 = scmp.lt.s32.totalorder %s552, 4
          %s554 = scalar_select %p553, %s552, 4
          %s555 = smul.u32 8, %s554
          %s556 = smul.u32 %s555, 2
          %s557 = ssub.s32 64, %s556
          %s558 = sshll.u32 %s557, 4
          %559 = vsyncadd %s520, %s558
          %p560 = scmp.ne.s32.totalorder 0, %s556
          %s561 = smul.addr %s551, 2
          %s562 = smul.addr %s561, 8
          %s563 = scalar_lea.hbm %s6, %s562
          %s564 = smul.u32 16, %s554
          %s565 = sshll.u32 %s523, 4
          %s566 = int_to_ptr.vmem [resolvable:$true] %s565
          %s567 = sshll.u32 %s563, 4
          %s568 = int_to_ptr.hbm [resolvable:$true] %s567
          %s569 = sshll.u32 %s564, 4
          %573 = dma.vmem_to_hbm [thread:$0]  (%p560), %s566, %s569, %s568, %s520, 256, 256, 16
        $region52: #{tpu_custom_call.1} parent=39 // pred_fallthru
          _
      $region40: #{tpu_custom_call.1} parent=5 // pred_fallthru
        _
      %p574 = scmp.le.s32.totalorder 2, %s20
      // Predicated region
      $region53: #{tpu_custom_call.1} parent=5 // pred_check
        %p575 = pneg %p574
      $region54: #{tpu_custom_call.1} parent=5 // pred_check_branch
        %577 = sbr.rel (%p575) target = $region56
      $region55: #{tpu_custom_call.1} parent=5 // pred_region
        %s578 = ssub.s32 %s20, 2
        // Predicated region
        $region57: #{tpu_custom_call.1} parent=55 // pred_check
          %p579 = pneg %p159
        $region58: #{tpu_custom_call.1} parent=55 // pred_check_branch
          %581 = sbr.rel (%p579) target = $region60
        $region59: #{tpu_custom_call.1} parent=55 // pred_region
          %s582 = sand.u32 %s144, 1
          %s583 = scalar_lea.sflag [#allocation4], %s582
          %s584 = sand.u32 %s144, 1
          %s585 = smul.addr %s584, 32
          %s586 = scalar_lea.vmem [#allocation5], %s585
          %588 = dma.done %s583, 512
        $region60: #{tpu_custom_call.1} parent=55 // pred_fallthru
          _
        // Predicated region
        $region61: #{tpu_custom_call.1} parent=55 // pred_check
          %p589 = pneg %p185
        $region62: #{tpu_custom_call.1} parent=55 // pred_check_branch
          %591 = sbr.rel (%p589) target = $region64
        $region63: #{tpu_custom_call.1} parent=55 // pred_region
          %s592 = sand.u32 %s170, 1
          %s593 = scalar_lea.sflag [#allocation7], %s592
          %s594 = sand.u32 %s170, 1
          %s595 = smul.addr %s594, 64
          %s596 = scalar_lea.vmem [#allocation6], %s595
          %598 = dma.done %s593, 1024
        $region64: #{tpu_custom_call.1} parent=55 // pred_fallthru
          _
      $region56: #{tpu_custom_call.1} parent=5 // pred_fallthru
        _
    $region6: #{tpu_custom_call.1} parent=1 // loop_footer
      %s24 = sadd.s32 1, %s20
    $region7: #{tpu_custom_call.1} parent=1 // loop_footer_branch
      %19 = sbr.rel target = $region3
    $region8: #{tpu_custom_call.1} parent=1 // loop_exit
      _
    %599 = vsyncpa [#allocation3], 1
    %s600 = scalar_lea.sflag [#allocation3], 1
    %601 = vsyncpa %s600, 1
    %602 = vsyncpa [#allocation4], 1
    %s603 = scalar_lea.sflag [#allocation4], 1
    %604 = vsyncpa %s603, 1
    %605 = vsyncpa [#allocation7], 1
    %s606 = scalar_lea.sflag [#allocation7], 1
    %607 = vsyncpa %s606, 1

</llo_original>
